<compile_context>
chip_gen: v5e
topology: v5e:2x2
jax: 0.10.0
libtpu: 0.0.40
codegen_flags: <defaults>
</compile_context>

<pallas_src>
import functools

import numpy as np
import jax
import jax.numpy as jnp
from jax.experimental import pallas as pl
from jax.experimental.pallas import tpu as pltpu

NODE_TYPE_SIZE = 9   # common.NodeType.SIZE in meshgraphnets
LANE = 128           # TPU lane width; all feature dims are padded to this


# ----------------------------- Pallas kernel --------------------------------
def _prop_kernel(a_ref, h_ref, *rest, apply_update):
    """One GCN propagation on one row tile of the normalized adjacency.

    a_ref : (TM, N_pad)   bf16  row tile of the normalized adjacency A
    h_ref : (N_pad, 128)  bf16  full lane-padded pre-transformed features
                                (X @ W.T + b, computed once in the wrapper)
    cur/prev (apply_update only): (TM, 128) f32 lane-padded world positions
    o_ref : (TM, 128)           output row tile
    """
    if apply_update:
        cur_ref, prev_ref, o_ref = rest
    else:
        (o_ref,) = rest

    # out[tile_rows, :] = A[tile_rows, :] @ h   (bf16 MXU, f32 accumulation)
    acc = jnp.dot(a_ref[...], h_ref[...], preferred_element_type=jnp.float32)

    if apply_update:
        # Model._update: position = 2*cur + acceleration - prev (kept in f32).
        acc = 2.0 * cur_ref[...] + acc - prev_ref[...]

    o_ref[...] = acc.astype(o_ref.dtype)


# --------------------------- tiling / VMEM budget ----------------------------
# Measured mem-bound tile efficiency (fraction of HBM roofline) per row-tile.
_TILE_EFF = ((2048, 0.87), (1024, 0.86), (512, 0.85), (256, 0.63), (128, 0.29))


def _vmem_pass_bytes(n_pad, tm, apply_update):
    nbuf = 2  # Pallas double-buffers every BlockSpec operand by default
    a_b = nbuf * tm * n_pad * 2             # bf16 A row tile (dominant stream)
    h_b = nbuf * n_pad * LANE * 2           # bf16 full h block (constant index)
    out_b = nbuf * tm * LANE * 4
    upd_b = nbuf * 2 * tm * LANE * 4 if apply_update else 0
    scratch = 2 << 20                        # Mosaic internal scratch allowance
    return a_b + h_b + out_b + upd_b + scratch


def _vmem_budget_bytes():
    # Per-generation VMEM: 128 MiB (v5e/v6e), 64 MiB per TensorCore (v7x).
    try:
        cap = int(pltpu.get_tpu_info().vmem_capacity_bytes)
    except Exception:  # conservative fallback (v7x-sized, per-core)
        cap = 64 * 1024 * 1024
    # ~85% of capacity; no additional per-tile hedging on top of this.
    return int(cap * 0.85)


def _plan_tiling(n, budget, max_tm=None):
    """Jointly choose (row tile TM, padded node count N_pad, vmem limit).

    Cost model: HBM traffic is dominated by the A stream (N_pad^2 bytes), and
    achieved bandwidth depends on TM -> minimize N_pad^2 / eff(TM) subject to
    the double-buffered working set fitting the VMEM budget.
    """
    best = None
    for tm, eff in _TILE_EFF:
        if max_tm is not None and tm > max_tm:
            continue
        n_pad = max(tm, -(-n // tm) * tm)          # ceil to multiple of TM
        need = _vmem_pass_bytes(n_pad, tm, apply_update=True)
        if need > budget:
            continue
        cost = (n_pad * n_pad) / eff
        if best is None or cost < best[0]:
            best = (cost, tm, n_pad)
    if best is None:
        # Nothing fits the budget: fall back to the smallest tile and raise the
        # limit to what it actually needs (graceful degradation, no silent OOM).
        tm = 128
        n_pad = max(128, -(-n // 128) * 128)
        need = _vmem_pass_bytes(n_pad, tm, apply_update=True)
        return tm, n_pad, max(budget, need)
    _, tm, n_pad = best
    return tm, n_pad, budget


# ------------------------------ layer wrapper --------------------------------
def _propagate(a_pad, h_pad, cur=None, prev=None, *, tm, n_pad, apply_update,
               out_dtype, vmem_limit):
    grid = (n_pad // tm,)

    in_specs = [
        pl.BlockSpec((tm, n_pad), lambda i: (i, 0)),    # streamed A row tile
        pl.BlockSpec((n_pad, LANE), lambda i: (0, 0)),  # full h block (const)
    ]
    args = [a_pad, h_pad]
    if apply_update:
        in_specs += [pl.BlockSpec((tm, LANE), lambda i: (i, 0)),   # cur
                     pl.BlockSpec((tm, LANE), lambda i: (i, 0))]   # prev
        args += [cur, prev]

    flops = 2 * n_pad * n_pad * LANE
    bytes_accessed = (n_pad * n_pad * 2          # A (bf16), read once
                      + n_pad * LANE * 2         # h (bf16)
                      + n_pad * LANE * 4         # output
                      + (2 * n_pad * LANE * 4 if apply_update else 0))

    kernel = functools.partial(_prop_kernel, apply_update=apply_update)
    return pl.pallas_call(
        kernel,
        out_shape=jax.ShapeDtypeStruct((n_pad, LANE), out_dtype),
        grid=grid,
        in_specs=in_specs,
        out_specs=pl.BlockSpec((tm, LANE), lambda i: (i, 0)),
        compiler_params=pltpu.CompilerParams(
            dimension_semantics=("parallel",),
            vmem_limit_bytes=int(vmem_limit)),
        cost_estimate=pl.CostEstimate(
            flops=flops, transcendentals=0, bytes_accessed=bytes_accessed),
    )(*args)


def make_gcn_runner(A, n, *, max_tm=None):
    """One-time per-mesh setup: tiling plan + cached padded bf16 adjacency.

    A: (n, n) f32 normalized adjacency (connectivity is static across a
    rollout, so the O(N^2) pad + bf16 cast is done exactly once here).
    Returns forward(node_feats, w1, b1, w2, b2, cur_pos, prev_pos, is_training).
    """
    budget = _vmem_budget_bytes()
    tm, n_pad, vmem_limit = _plan_tiling(n, budget, max_tm)

    a_host = np.zeros((n_pad, n_pad), np.float32)
    a_host[:n, :n] = np.asarray(A, dtype=np.float32)
    a_pad = jnp.asarray(a_host, dtype=jnp.bfloat16)   # cached, reused per step

    def forward(node_feats, w1, b1, w2, b2, cur_pos=None, prev_pos=None,
                is_training=False):
        f32, bf16 = jnp.float32, jnp.bfloat16
        out_ch = w1.shape[0]

        # Layer-1 Linear hoisted out of the kernel (tiny XLA matmul, f32),
        # padded lane-dense + cast to bf16 exactly once.
        h1 = node_feats.astype(f32) @ w1.T.astype(f32) + b1.astype(f32)
        h1_p = jnp.zeros((n_pad, LANE), bf16).at[:n, :out_ch].set(
            h1.astype(bf16))

        # Pass 1: y1 = A @ h1  (intermediate kept bf16, lane-dense)
        y1 = _propagate(a_pad, h1_p, tm=tm, n_pad=n_pad, apply_update=False,
                        out_dtype=bf16, vmem_limit=vmem_limit)

        # Layer-2 Linear, also hoisted; lane-padded weights so padded lanes/rows
        # stay zero wherever A's zero padding does not already kill them.
        w2_p = jnp.zeros((LANE, LANE), f32).at[:out_ch, :out_ch].set(
            w2.T.astype(f32))
        b2_p = jnp.zeros((1, LANE), f32).at[0, :out_ch].set(b2.astype(f32))
        h2_p = (y1.astype(f32) @ w2_p + b2_p).astype(bf16)

        # Pass 2: z = A @ h2, plus the fused inference-time integration.
        if is_training:
            y2 = _propagate(a_pad, h2_p, tm=tm, n_pad=n_pad, apply_update=False,
                            out_dtype=f32, vmem_limit=vmem_limit)
        else:
            cur_p = jnp.zeros((n_pad, LANE), f32).at[:n, :out_ch].set(
                cur_pos.astype(f32))
            prev_p = jnp.zeros((n_pad, LANE), f32).at[:n, :out_ch].set(
                prev_pos.astype(f32))
            y2 = _propagate(a_pad, h2_p, cur_p, prev_p, tm=tm, n_pad=n_pad,
                            apply_update=True, out_dtype=f32,
                            vmem_limit=vmem_limit)
        return y2[:n, :out_ch]

    return forward


# ------------------------------ graph glue ----------------------------------
def triangles_to_edges(cells, num_nodes):
    """common.triangles_to_edges: unique undirected edges, returned both ways."""
    e = np.concatenate([cells[:, 0:2], cells[:, 1:3],
                        np.stack([cells[:, 2], cells[:, 0]], axis=1)], axis=0)
    lo = e.min(axis=1).astype(np.int64)
    hi = e.max(axis=1).astype(np.int64)
    packed = np.unique(hi * num_nodes + lo)
    hi, lo = packed // num_nodes, packed % num_nodes
    senders = np.concatenate([hi, lo]).astype(np.int32)
    receivers = np.concatenate([lo, hi]).astype(np.int32)
    return senders, receivers


def add_self_loops(edge_index, num_nodes):
    loops = np.arange(num_nodes, dtype=edge_index.dtype)
    return np.concatenate([edge_index, np.stack([loops, loops])], axis=1)


def build_gcn_adjacency(edge_index, num_nodes):
    """GCNConv's normalization + scatter-add as a dense matrix.

    GCNConv adds its own self loops on top of the ones Model.forward already
    added, so self-loop edges appear twice (kept for exact fidelity).
    """
    edge_index = add_self_loops(edge_index, num_nodes)
    row, col = edge_index[0], edge_index[1]   # row = source (x_j), col = target
    deg = np.bincount(col, minlength=num_nodes).astype(np.float32)
    with np.errstate(divide="ignore"):
        dinv = deg ** -0.5
    dinv[np.isinf(dinv)] = 0.0
    norm = dinv[row] * dinv[col]
    A = np.zeros((num_nodes, num_nodes), dtype=np.float32)
    np.add.at(A, (col, row), norm)            # out[col] += norm * x[row]
    return A


def build_node_features(world_pos, prev_world_pos, node_type):
    velocity = world_pos - prev_world_pos
    one_hot = jax.nn.one_hot(node_type[:, 0].astype(jnp.int32),
                             NODE_TYPE_SIZE, dtype=world_pos.dtype)
    return jnp.concatenate([velocity, one_hot], axis=-1)   # (N, 12)


# --------------------------------- main --------------------------------------
if __name__ == "__main__":
    def make_grid_mesh(rows, cols):
        n = rows * cols
        idx = np.arange(n).reshape(rows, cols)
        tris = []
        for i in range(rows - 1):
            for j in range(cols - 1):
                a, b, c, d = (idx[i, j], idx[i, j + 1],
                              idx[i + 1, j], idx[i + 1, j + 1])
                tris.append([a, b, d])
                tris.append([a, d, c])
        return np.array(tris, dtype=np.int32), n

    def run_case(key, rows, cols, max_tm=None):
        cells, n = make_grid_mesh(rows, cols)
        k1, k2, k3, kw1, kb1, kw2, kb2 = jax.random.split(key, 7)
        world_pos = jax.random.normal(k1, (n, 3), jnp.float32)
        prev_world_pos = world_pos + 0.01 * jax.random.normal(
            k2, (n, 3), jnp.float32)
        node_type = jax.random.randint(k3, (n, 1), 0, NODE_TYPE_SIZE)
        # TODO(synk): edge_features from _build_graph (relative positions /
        # norms) are dead code in the original forward (only connectivity is
        # used by the GCN layers) - skipped.

        in_ch, out_ch = 3 + NODE_TYPE_SIZE, 3
        lim1 = 1.0 / np.sqrt(in_ch)
        w1 = jax.random.uniform(kw1, (out_ch, in_ch), jnp.float32, -lim1, lim1)
        b1 = jax.random.uniform(kb1, (out_ch,), jnp.float32, -lim1, lim1)
        lim2 = 1.0 / np.sqrt(out_ch)
        w2 = jax.random.uniform(kw2, (out_ch, out_ch), jnp.float32, -lim2, lim2)
        b2 = jax.random.uniform(kb2, (out_ch,), jnp.float32, -lim2, lim2)

        # Graph construction (matches Model.forward / _build_graph).
        senders, receivers = triangles_to_edges(cells, n)
        edge_index = np.stack([receivers, senders])  # stack((receivers, senders))
        edge_index = add_self_loops(edge_index, n)   # add_self_loops in forward
        A = build_gcn_adjacency(edge_index, n)

        # One-time per-mesh setup (tiling plan + cached padded bf16 adjacency).
        forward = make_gcn_runner(A, n, max_tm=max_tm)

        node_feats = build_node_features(world_pos, prev_world_pos, node_type)
        out = forward(node_feats, w1, b1, w2, b2,
                      world_pos, prev_world_pos, is_training=False)
        out = jax.block_until_ready(out)

        # pure-JAX f32 reference (kernel uses bf16 for the A stream -> loose tol)
        A_j = jnp.asarray(A)
        h = node_feats @ w1.T + b1
        h = A_j @ h
        h = h @ w2.T + b2
        h = A_j @ h
        ref = 2.0 * world_pos + h - prev_world_pos
        np.testing.assert_allclose(np.asarray(out), np.asarray(ref),
                                   rtol=2e-2, atol=2e-2)

    key = jax.random.PRNGKey(0)
    k_small, k_tiled, k_auto = jax.random.split(key, 3)
    run_case(k_small, 4, 4)                 # N=16  -> n_pad=128, single tile
    run_case(k_tiled, 20, 20, max_tm=128)   # N=400 -> n_pad=512, 4 row tiles
    run_case(k_auto, 20, 20)                # N=400 -> planner picks TM=512
    print("KERNEL_OK")
</pallas_src>

<mosaic_0001>
module attributes {stable_mosaic.version = 11 : i64} {
  func.func @_prop_kernel(%arg0: i32, %arg1: memref<128x128xbf16, #tpu.memory_space<vmem>>, %arg2: memref<128x128xbf16, #tpu.memory_space<vmem>>, %arg3: memref<128x128xbf16, #tpu.memory_space<vmem>>) attributes {dimension_semantics = [#tpu.dimension_semantics<parallel>], iteration_bounds = array<i64: 1>, scalar_prefetch = 0 : i64, scratch_operands = 0 : i64, tpu.core_type = #tpu.core_type<tc>, window_params = [{transform_indices = @transform_0, window_bounds = array<i64: 128, 128>}, {pipeline_mode = #tpu.pipeline_mode<synchronous>, transform_indices = @transform_1, window_bounds = array<i64: 128, 128>}, {transform_indices = @transform_2, window_bounds = array<i64: 128, 128>}]} {
    %c0 = arith.constant 0 : index
    %c0_0 = arith.constant 0 : index
    %0 = vector.load %arg1[%c0, %c0_0] : memref<128x128xbf16, #tpu.memory_space<vmem>>, vector<128x128xbf16>
    %c0_1 = arith.constant 0 : index
    %c0_2 = arith.constant 0 : index
    %1 = vector.load %arg2[%c0_1, %c0_2] : memref<128x128xbf16, #tpu.memory_space<vmem>>, vector<128x128xbf16>
    %cst = arith.constant dense<0.000000e+00> : vector<128x128xf32>
    %2 = tpu.matmul %0, %1, %cst {dimension_numbers = #tpu.dot_dimension_numbers<[1], [0], [0], [1], [0, 0, 1, 1], [], []>} : vector<128x128xbf16>, vector<128x128xbf16>, vector<128x128xf32> -> vector<128x128xf32>
    %3 = arith.truncf %2 : vector<128x128xf32> to vector<128x128xbf16>
    %c0_3 = arith.constant 0 : index
    %c0_4 = arith.constant 0 : index
    %4 = vector.load %arg3[%c0_3, %c0_4] : memref<128x128xbf16, #tpu.memory_space<vmem>>, vector<128x128xbf16>
    tpu.vector_store %arg3[%c0_3, %c0_4], %3 {strides = array<i32>} : memref<128x128xbf16, #tpu.memory_space<vmem>>, vector<128x128xbf16>,
    return
  }
  func.func @transform_0(%arg0: i32) -> (i32, i32) {
    %c0_i32 = arith.constant 0 : i32
    %c0_i32_0 = arith.constant 0 : i32
    return %arg0, %c0_i32 : i32, i32
  }
  func.func @transform_1(%arg0: i32) -> (i32, i32) {
    %c0_i32 = arith.constant 0 : i32
    %c0_i32_0 = arith.constant 0 : i32
    %c0_i32_1 = arith.constant 0 : i32
    return %c0_i32, %c0_i32_0 : i32, i32
  }
  func.func @transform_2(%arg0: i32) -> (i32, i32) {
    %c0_i32 = arith.constant 0 : i32
    %c0_i32_0 = arith.constant 0 : i32
    return %arg0, %c0_i32 : i32, i32
  }
}

</mosaic_0001>

<llo_original>
// kernel: tpu_custom_call.1
$region0: #{tpu_custom_call.1}
  #allocation0 [shape = 'u32[]', space=smem, size = 0x4, offset = 0x4, fixed_abs, tag = 'smem constant byte address 0x4 - core index']
  #allocation1 [shape = 'u32[72,128]{1,0:T(1,128)}', space=vmem, size = 0x9000, scoped, tag = 'internal scratch']
  %s0 = inlined_call_operand.hbm [shape: bf16[128,128], index: 0, kind: input, shape index: {}]
  %s1 = inlined_call_operand.hbm [shape: bf16[128,128], index: 1, kind: input, shape index: {}]
  %s2 = inlined_call_operand.hbm [shape: bf16[128,128], index: 2, kind: output, shape index: {}]
  %s3 = sld [smem:[#allocation0]]
  $region26: #{tpu_custom_call.1} parent=0
    _
  %s5 = ssub.s32 1, %s3
  %s6 = scalar_select 0, %s5, %s3
  $region1: #{tpu_custom_call.1} parent=0
    #allocation2 [shape = 'u8[32768]{0}', space=vmem, size = 0x8000, scoped, tag = 'input window, operand 0, single buffered']
    #allocation3 [shape = 's32[1]{0}', space=sflag, size = 0x4, scoped, tag = 'scoped memory for tpu_custom_call.1']
    #allocation4 [shape = 's32[1]{0}', space=sflag, size = 0x4, scoped, tag = 'scoped memory for tpu_custom_call.1']
    #allocation5 [shape = 'u8[32768]{0}', space=vmem, size = 0x8000, scoped, tag = 'input window, operand 1, single buffered']
    #allocation6 [shape = 's32[1]{0}', space=sflag, size = 0x4, scoped, tag = 'scoped memory for tpu_custom_call.1']
    #allocation7 [shape = 'u8[32768]{0}', space=vmem, size = 0x8000, scoped, tag = 'output window, operand 0, single buffered']
    %7 = vsyncpa [#allocation3], 0
    %8 = vsyncpa [#allocation6], 0
    %9 = vsyncpa [#allocation4], 0
    // Predicated region
    $region2: #{tpu_custom_call.1} parent=1 // pred_check
      _
    $region3: #{tpu_custom_call.1} parent=1 // pred_check_branch
      %11 = sbr.rel (0) target = $region5
    $region4: #{tpu_custom_call.1} parent=1 // pred_region
      %13 = vsyncadd [#allocation3], 0
      %s14 = sshll.u32 %s0, 4
      %s15 = int_to_ptr.hbm [resolvable:$true] %s14
      %s16 = sshll.u32 [#allocation2], 4
      %s17 = int_to_ptr.vmem [resolvable:$true] %s16
      %22 = dma.hbm_to_vmem [thread:$0]  %s15, 1024, %s17, [#allocation3], 64, 64, 4
    $region5: #{tpu_custom_call.1} parent=1 // pred_fallthru
      _
    // Predicated region
    $region6: #{tpu_custom_call.1} parent=1 // pred_check
      _
    $region7: #{tpu_custom_call.1} parent=1 // pred_check_branch
      %24 = sbr.rel (0) target = $region9
    $region8: #{tpu_custom_call.1} parent=1 // pred_region
      %26 = vsyncadd [#allocation6], 0
      %s27 = sshll.u32 %s1, 4
      %s28 = int_to_ptr.hbm [resolvable:$true] %s27
      %s29 = sshll.u32 [#allocation5], 4
      %s30 = int_to_ptr.vmem [resolvable:$true] %s29
      %35 = dma.hbm_to_vmem [thread:$0]  %s28, 1024, %s30, [#allocation6], 64, 64, 4
    $region9: #{tpu_custom_call.1} parent=1 // pred_fallthru
      _
    // Predicated region
    $region10: #{tpu_custom_call.1} parent=1 // pred_check
      _
    $region11: #{tpu_custom_call.1} parent=1 // pred_check_branch
      %37 = sbr.rel (0) target = $region13
    $region12: #{tpu_custom_call.1} parent=1 // pred_region
      %39 = dma.done [#allocation3], 1024
    $region13: #{tpu_custom_call.1} parent=1 // pred_fallthru
      _
    // Predicated region
    $region14: #{tpu_custom_call.1} parent=1 // pred_check
      _
    $region15: #{tpu_custom_call.1} parent=1 // pred_check_branch
      %41 = sbr.rel (0) target = $region17
    $region16: #{tpu_custom_call.1} parent=1 // pred_region
      %43 = dma.done [#allocation6], 1024
    $region17: #{tpu_custom_call.1} parent=1 // pred_fallthru
      _
    %v44 = vld [vmem:[#allocation2] sm:$0xf]
    %v45 = vld [vmem:[#allocation2 + $0x4] sm:$0xf]
    %v46 = vld [vmem:[#allocation2 + $0x8] sm:$0xf]
    %v47 = vld [vmem:[#allocation2 + $0xc] sm:$0xf]
    %v48 = vld [vmem:[#allocation2 + $0x10] sm:$0xf]
    %v49 = vld [vmem:[#allocation2 + $0x14] sm:$0xf]
    %v50 = vld [vmem:[#allocation2 + $0x18] sm:$0xf]
    %v51 = vld [vmem:[#allocation2 + $0x1c] sm:$0xf]
    %v52 = vld [vmem:[#allocation2 + $0x20] sm:$0xf]
    %v53 = vld [vmem:[#allocation2 + $0x24] sm:$0xf]
    %v54 = vld [vmem:[#allocation2 + $0x28] sm:$0xf]
    %v55 = vld [vmem:[#allocation2 + $0x2c] sm:$0xf]
    %v56 = vld [vmem:[#allocation2 + $0x30] sm:$0xf]
    %v57 = vld [vmem:[#allocation2 + $0x34] sm:$0xf]
    %v58 = vld [vmem:[#allocation2 + $0x38] sm:$0xf]
    %v59 = vld [vmem:[#allocation2 + $0x3c] sm:$0xf]
    %v60 = vld [vmem:[#allocation5] sm:$0xf]
    %v61 = vld [vmem:[#allocation5 + $0x4] sm:$0xf]
    %v62 = vld [vmem:[#allocation5 + $0x8] sm:$0xf]
    %v63 = vld [vmem:[#allocation5 + $0xc] sm:$0xf]
    %v64 = vld [vmem:[#allocation5 + $0x10] sm:$0xf]
    %v65 = vld [vmem:[#allocation5 + $0x14] sm:$0xf]
    %v66 = vld [vmem:[#allocation5 + $0x18] sm:$0xf]
    %v67 = vld [vmem:[#allocation5 + $0x1c] sm:$0xf]
    %v68 = vld [vmem:[#allocation5 + $0x20] sm:$0xf]
    %v69 = vld [vmem:[#allocation5 + $0x24] sm:$0xf]
    %v70 = vld [vmem:[#allocation5 + $0x28] sm:$0xf]
    %v71 = vld [vmem:[#allocation5 + $0x2c] sm:$0xf]
    %v72 = vld [vmem:[#allocation5 + $0x30] sm:$0xf]
    %v73 = vld [vmem:[#allocation5 + $0x34] sm:$0xf]
    %v74 = vld [vmem:[#allocation5 + $0x38] sm:$0xf]
    %v75 = vld [vmem:[#allocation5 + $0x3c] sm:$0xf]
    %v92 = vunpack.c.l.b16 %v44
    %v93 = vunpack.c.l.b16 %v45
    %v94 = vunpack.c.l.b16 %v46
    %v95 = vunpack.c.l.b16 %v47
    %v96 = vunpack.c.l.b16 %v48
    %v97 = vunpack.c.l.b16 %v49
    %v98 = vunpack.c.l.b16 %v50
    %v99 = vunpack.c.l.b16 %v51
    %v100 = vunpack.c.l.b16 %v52
    %v101 = vunpack.c.l.b16 %v53
    %v102 = vunpack.c.l.b16 %v54
    %v103 = vunpack.c.l.b16 %v55
    %v104 = vunpack.c.l.b16 %v56
    %v105 = vunpack.c.l.b16 %v57
    %v106 = vunpack.c.l.b16 %v58
    %v107 = vunpack.c.l.b16 %v59
    %v108 = vpack.c.b16 %v93, %v92
    %v109 = vpack.c.b16 %v95, %v94
    %v110 = vpack.c.b16 %v97, %v96
    %v111 = vpack.c.b16 %v99, %v98
    %v112 = vpack.c.b16 %v101, %v100
    %v113 = vpack.c.b16 %v103, %v102
    %v114 = vpack.c.b16 %v105, %v104
    %v115 = vpack.c.b16 %v107, %v106
    %v140 = vunpack.c.l.b16 %v60
    %v141 = vunpack.c.l.b16 %v61
    %v142 = vunpack.c.l.b16 %v62
    %v143 = vunpack.c.l.b16 %v63
    %v144 = vunpack.c.l.b16 %v64
    %v145 = vunpack.c.l.b16 %v65
    %v146 = vunpack.c.l.b16 %v66
    %v147 = vunpack.c.l.b16 %v67
    %v148 = vunpack.c.l.b16 %v68
    %v149 = vunpack.c.l.b16 %v69
    %v150 = vunpack.c.l.b16 %v70
    %v151 = vunpack.c.l.b16 %v71
    %v152 = vunpack.c.l.b16 %v72
    %v153 = vunpack.c.l.b16 %v73
    %v154 = vunpack.c.l.b16 %v74
    %v155 = vunpack.c.l.b16 %v75
    %v156 = vpack.c.b16 %v141, %v140
    %v157 = vpack.c.b16 %v143, %v142
    %v158 = vpack.c.b16 %v145, %v144
    %v159 = vpack.c.b16 %v147, %v146
    %v160 = vpack.c.b16 %v149, %v148
    %v161 = vpack.c.b16 %v151, %v150
    %v162 = vpack.c.b16 %v153, %v152
    %v163 = vpack.c.b16 %v155, %v154
    %172 = vmatpush.bf16.msra.mxu0 %v163
    %173 = vmatpush.bf16.msra.mxu0 %v162
    %174 = vmatpush.bf16.msra.mxu0 %v161
    %175 = vmatpush.bf16.msra.mxu0 %v160
    %176 = vmatpush.bf16.msra.mxu0 %v159
    %177 = vmatpush.bf16.msra.mxu0 %v158
    %178 = vmatpush.bf16.msra.mxu0 %v157
    %179 = vmatpush.bf16.msra.mxu0 %v156
    %180 = vmatmul.bf16.gmra.mxu0 %v108
    %v181 = vpop.f32.mrf.mxu0
    %v182 = vadd.f32 0.0, %v181
    %v183 = vpop.f32.mrf.mxu0
    %v184 = vadd.f32 0.0, %v183
    %185 = vmatmul.bf16.gmra.mxu0 %v109
    %v186 = vpop.f32.mrf.mxu0
    %v187 = vadd.f32 0.0, %v186
    %v188 = vpop.f32.mrf.mxu0
    %v189 = vadd.f32 0.0, %v188
    %190 = vmatmul.bf16.gmra.mxu0 %v110
    %v191 = vpop.f32.mrf.mxu0
    %v192 = vadd.f32 0.0, %v191
    %v193 = vpop.f32.mrf.mxu0
    %v194 = vadd.f32 0.0, %v193
    %195 = vmatmul.bf16.gmra.mxu0 %v111
    %v196 = vpop.f32.mrf.mxu0
    %v197 = vadd.f32 0.0, %v196
    %v198 = vpop.f32.mrf.mxu0
    %v199 = vadd.f32 0.0, %v198
    %200 = vmatmul.bf16.gmra.mxu0 %v112
    %v201 = vpop.f32.mrf.mxu0
    %v202 = vadd.f32 0.0, %v201
    %v203 = vpop.f32.mrf.mxu0
    %v204 = vadd.f32 0.0, %v203
    %205 = vmatmul.bf16.gmra.mxu0 %v113
    %v206 = vpop.f32.mrf.mxu0
    %v207 = vadd.f32 0.0, %v206
    %v208 = vpop.f32.mrf.mxu0
    %v209 = vadd.f32 0.0, %v208
    %210 = vmatmul.bf16.gmra.mxu0 %v114
    %v211 = vpop.f32.mrf.mxu0
    %v212 = vadd.f32 0.0, %v211
    %v213 = vpop.f32.mrf.mxu0
    %v214 = vadd.f32 0.0, %v213
    %215 = vmatmul.bf16.gmra.mxu0 %v115
    %v216 = vpop.f32.mrf.mxu0
    %v217 = vadd.f32 0.0, %v216
    %v218 = vpop.f32.mrf.mxu0
    %v219 = vadd.f32 0.0, %v218
    %220 = vdwg.mxu0
    %v221 = vpack.c.bf16 %v182, %v182
    %v222 = vpack.c.bf16 %v184, %v184
    %v223 = vpack.c.bf16 %v187, %v187
    %v224 = vpack.c.bf16 %v189, %v189
    %v225 = vpack.c.bf16 %v192, %v192
    %v226 = vpack.c.bf16 %v194, %v194
    %v227 = vpack.c.bf16 %v197, %v197
    %v228 = vpack.c.bf16 %v199, %v199
    %v229 = vpack.c.bf16 %v202, %v202
    %v230 = vpack.c.bf16 %v204, %v204
    %v231 = vpack.c.bf16 %v207, %v207
    %v232 = vpack.c.bf16 %v209, %v209
    %v233 = vpack.c.bf16 %v212, %v212
    %v234 = vpack.c.bf16 %v214, %v214
    %v235 = vpack.c.bf16 %v217, %v217
    %v236 = vpack.c.bf16 %v219, %v219
    %237 = vst [vmem:[#allocation7] sm:$0xf] %v221
    %238 = vst [vmem:[#allocation7 + $0x4] sm:$0xf] %v222
    %239 = vst [vmem:[#allocation7 + $0x8] sm:$0xf] %v223
    %240 = vst [vmem:[#allocation7 + $0xc] sm:$0xf] %v224
    %241 = vst [vmem:[#allocation7 + $0x10] sm:$0xf] %v225
    %242 = vst [vmem:[#allocation7 + $0x14] sm:$0xf] %v226
    %243 = vst [vmem:[#allocation7 + $0x18] sm:$0xf] %v227
    %244 = vst [vmem:[#allocation7 + $0x1c] sm:$0xf] %v228
    %245 = vst [vmem:[#allocation7 + $0x20] sm:$0xf] %v229
    %246 = vst [vmem:[#allocation7 + $0x24] sm:$0xf] %v230
    %247 = vst [vmem:[#allocation7 + $0x28] sm:$0xf] %v231
    %248 = vst [vmem:[#allocation7 + $0x2c] sm:$0xf] %v232
    %249 = vst [vmem:[#allocation7 + $0x30] sm:$0xf] %v233
    %250 = vst [vmem:[#allocation7 + $0x34] sm:$0xf] %v234
    %251 = vst [vmem:[#allocation7 + $0x38] sm:$0xf] %v235
    %252 = vst [vmem:[#allocation7 + $0x3c] sm:$0xf] %v236
    // Predicated region
    $region18: #{tpu_custom_call.1} parent=1 // pred_check
      _
    $region19: #{tpu_custom_call.1} parent=1 // pred_check_branch
      %254 = sbr.rel (0) target = $region21
    $region20: #{tpu_custom_call.1} parent=1 // pred_region
      %256 = vsyncadd [#allocation4], 0
      %s257 = sshll.u32 [#allocation7], 4
      %s258 = int_to_ptr.vmem [resolvable:$true] %s257
      %s259 = sshll.u32 %s2, 4
      %s260 = int_to_ptr.hbm [resolvable:$true] %s259
      %265 = dma.vmem_to_hbm [thread:$0]  %s258, 1024, %s260, [#allocation4], 64, 64, 4
    $region21: #{tpu_custom_call.1} parent=1 // pred_fallthru
      _
    // Predicated region
    $region22: #{tpu_custom_call.1} parent=1 // pred_check
      _
    $region23: #{tpu_custom_call.1} parent=1 // pred_check_branch
      %267 = sbr.rel (0) target = $region25
    $region24: #{tpu_custom_call.1} parent=1 // pred_region
      %269 = dma.done [#allocation4], 1024
    $region25: #{tpu_custom_call.1} parent=1 // pred_fallthru
      _
    %270 = vsyncpa [#allocation3], 1
    %271 = vsyncpa [#allocation6], 1
    %272 = vsyncpa [#allocation4], 1

</llo_original>
